<compile_context>
chip_gen: v6e
topology: v6e:2x2x1
jax: 0.10.0
libtpu: 0.0.40
codegen_flags: <defaults>
</compile_context>

<pallas_src>
import functools

import jax
import jax.numpy as jnp
from jax.experimental import pallas as pl
from jax.experimental.pallas import tpu as pltpu

NUM_CLASSES = 40
FC_PAD = 128   # lane-dense padded fc output width (multiple of 128)
C_PAD = 8      # xyz channels padded 3 -> 8 so layer1 rides the MXU


# ---------------------------------------------------------------------------
# Fused kernel: per-point MLP chain + global max pool + fc epilogue
# ---------------------------------------------------------------------------
def _fused_kernel(x_ref, w1_ref, b1_ref, w2_ref, b2_ref, w3_ref, b3_ref,
                  wf_ref, bf_ref, o_ref, acc_ref):
    n = pl.program_id(1)
    bt, tn, cpad = x_ref.shape

    @pl.when(n == 0)
    def _init():
        acc_ref[...] = jnp.full(acc_ref.shape, -jnp.inf, dtype=acc_ref.dtype)

    # (Bt, TILE_N, 8) -> (Bt*TILE_N, 8); single bf16 cast feeds the MXU chain.
    x = x_ref[...].reshape(bt * tn, cpad).astype(jnp.bfloat16)

    # layer1 (3 -> 64): channel-padded K=8 matmul (padded w1 rows are zero).
    h = jnp.dot(x, w1_ref[...], preferred_element_type=jnp.float32) + b1_ref[...]
    h = jnp.maximum(h, 0.0)

    # layer2 (64 -> 128): bf16 operands, f32 accumulation on the MXU.
    h = jnp.dot(h.astype(jnp.bfloat16), w2_ref[...],
                preferred_element_type=jnp.float32) + b2_ref[...]
    h = jnp.maximum(h, 0.0)

    # layer3 (128 -> 256)
    h = jnp.dot(h.astype(jnp.bfloat16), w3_ref[...],
                preferred_element_type=jnp.float32) + b3_ref[...]
    h = jnp.maximum(h, 0.0)

    # AdaptiveMaxPool1d(1) as a running max over point tiles, per batch row.
    h3 = h.reshape(bt, tn, 256)
    acc_ref[...] = jnp.maximum(acc_ref[...], jnp.max(h3, axis=1))

    # Last point tile: fc epilogue with M = Bt, lane-dense 128-wide store.
    @pl.when(n == pl.num_programs(1) - 1)
    def _epilogue():
        pooled = acc_ref[...]                                    # (Bt, 256) f32
        y = jnp.dot(pooled.astype(jnp.bfloat16), wf_ref[...],
                    preferred_element_type=jnp.float32) + bf_ref[...]
        o_ref[...] = y[None].astype(o_ref.dtype)                 # (1, Bt, 128)


# ---------------------------------------------------------------------------
# Parameters (deterministic init, PyTorch-Linear-style uniform bounds)
# ---------------------------------------------------------------------------
def init_params(key):
    ks = jax.random.split(key, 8)

    def lin(kw, kb, fan_in, fan_out):
        bound = 1.0 / jnp.sqrt(jnp.float32(fan_in))
        w = jax.random.uniform(kw, (fan_in, fan_out), jnp.float32, -bound, bound)
        b = jax.random.uniform(kb, (fan_out,), jnp.float32, -bound, bound)
        return w, b

    w1, b1 = lin(ks[0], ks[1], 3, 64)      # layer1: pointBase_conv(3, 64, ...)
    w2, b2 = lin(ks[2], ks[3], 64, 128)    # layer2: pointBase_conv(64, 128, ...)
    w3, b3 = lin(ks[4], ks[5], 128, 256)   # layer3: pointBase_conv(128, 256, ...)
    wf, bf = lin(ks[6], ks[7], 256, 40)    # fc: Linear(256, 40)
    return dict(w1=w1, b1=b1, w2=w2, b2=b2, w3=w3, b3=b3, wf=wf, bf=bf)


# ---------------------------------------------------------------------------
# Tiling choice: big tiles + batch folding, >= 2 parallel blocks when possible
# ---------------------------------------------------------------------------
def _choose_tiling(B, N, rows_per_step, max_bt):
    rows_per_step = max(8, (rows_per_step // 8) * 8)
    n_pad8 = 8 * ((N + 7) // 8)
    tn = min(n_pad8, rows_per_step)                 # multiple of 8
    n_tiles = -(-n_pad8 // tn)
    n_pad = n_tiles * tn
    bt = max(1, min(max_bt, rows_per_step // tn, B))
    # Keep >= 2 blocks along the "parallel" batch axis (v7x megacore) whenever
    # the batch allows it.
    while bt > 1 and -(-B // bt) < 2:
        bt = max(1, bt // 2)
    b_tiles = -(-B // bt)
    b_pad = b_tiles * bt
    return tn, n_tiles, n_pad, bt, b_tiles, b_pad


# ---------------------------------------------------------------------------
# Forward pass
# ---------------------------------------------------------------------------
@functools.partial(jax.jit, static_argnames=("rows_per_step", "max_bt"))
def point_anchor_net(xyz, params, rows_per_step=8192, max_bt=16):
    B, C, N = xyz.shape
    assert C == 3
    tn, n_tiles, n_pad, bt, b_tiles, b_pad = _choose_tiling(
        B, N, rows_per_step, max_bt)

    # (B, 3, N) -> (B, N, 3); one edge-replicated pad handles points (max-pool
    # invariant), channels 3->8 (hit zero rows of w1), and batch (sliced away).
    x = jnp.transpose(xyz, (0, 2, 1)).astype(jnp.float32)
    x = jnp.pad(x, ((0, b_pad - B), (0, n_pad - N), (0, C_PAD - 3)), mode="edge")

    # bf16 weight storage for the MXU matmuls (f32 accumulation in-kernel);
    # biases stay f32.  layer1/fc weights are zero-padded to MXU-friendly dims.
    w1 = jnp.zeros((C_PAD, 64), jnp.float32).at[:3, :].set(params["w1"])
    w1 = w1.astype(jnp.bfloat16)
    b1 = params["b1"].reshape(1, -1).astype(jnp.float32)
    w2 = params["w2"].astype(jnp.bfloat16)
    b2 = params["b2"].reshape(1, -1).astype(jnp.float32)
    w3 = params["w3"].astype(jnp.bfloat16)
    b3 = params["b3"].reshape(1, -1).astype(jnp.float32)
    wf = jnp.zeros((256, FC_PAD), jnp.float32).at[:, :NUM_CLASSES].set(params["wf"])
    wf = wf.astype(jnp.bfloat16)
    bf = jnp.zeros((1, FC_PAD), jnp.float32).at[:, :NUM_CLASSES].set(params["bf"])

    def const_spec(shape):
        # Weights/biases stay resident in VMEM across the whole grid.
        return pl.BlockSpec(shape, lambda b, n: (0, 0))

    flops = (2 * B * N * (C_PAD * 64 + 64 * 128 + 128 * 256)
             + 2 * B * 256 * FC_PAD)
    weight_bytes = (2 * (C_PAD * 64 + 64 * 128 + 128 * 256 + 256 * FC_PAD)
                    + 4 * (64 + 128 + 256 + FC_PAD))
    bytes_accessed = 4 * b_pad * n_pad * C_PAD + weight_bytes + 4 * b_pad * FC_PAD

    out = pl.pallas_call(
        _fused_kernel,
        out_shape=jax.ShapeDtypeStruct((b_tiles, bt, FC_PAD), jnp.float32),
        grid_spec=pltpu.PrefetchScalarGridSpec(
            num_scalar_prefetch=0,
            grid=(b_tiles, n_tiles),
            in_specs=[
                pl.BlockSpec((bt, tn, C_PAD), lambda b, n: (b, n, 0)),
                const_spec((C_PAD, 64)),
                const_spec((1, 64)),
                const_spec((64, 128)),
                const_spec((1, 128)),
                const_spec((128, 256)),
                const_spec((1, 256)),
                const_spec((256, FC_PAD)),
                const_spec((1, FC_PAD)),
            ],
            out_specs=pl.BlockSpec((1, bt, FC_PAD), lambda b, n: (b, 0, 0)),
            scratch_shapes=[pltpu.VMEM((bt, 256), jnp.float32)],
        ),
        compiler_params=pltpu.CompilerParams(
            dimension_semantics=("parallel", "arbitrary"),
            vmem_limit_bytes=48 * 1024 * 1024,
        ),
        cost_estimate=pl.CostEstimate(
            flops=flops, transcendentals=0, bytes_accessed=bytes_accessed),
    )(x, w1, b1, w2, b2, w3, b3, wf, bf)

    return out.reshape(b_pad, FC_PAD)[:B, :NUM_CLASSES]


if __name__ == "__main__":
    key = jax.random.PRNGKey(0)
    k_param, k_data = jax.random.split(key)

    params = init_params(k_param)

    B, N = 2, 16
    xyz = jax.random.normal(k_data, (B, 3, N), dtype=jnp.float32)

    out = point_anchor_net(xyz, params)
    out = jax.block_until_ready(out)

    assert out.shape == (B, NUM_CLASSES), out.shape
    assert bool(jnp.all(jnp.isfinite(out)))
    print("KERNEL_OK")
</pallas_src>

<mosaic_0001>
module attributes {stable_mosaic.version = 11 : i64} {
  func.func @_fused_kernel(%arg0: i32, %arg1: i32, %arg2: memref<1x16x8xf32, #tpu.memory_space<vmem>>, %arg3: memref<8x64xbf16, #tpu.memory_space<vmem>>, %arg4: memref<1x64xf32, #tpu.memory_space<vmem>>, %arg5: memref<64x128xbf16, #tpu.memory_space<vmem>>, %arg6: memref<1x128xf32, #tpu.memory_space<vmem>>, %arg7: memref<128x256xbf16, #tpu.memory_space<vmem>>, %arg8: memref<1x256xf32, #tpu.memory_space<vmem>>, %arg9: memref<256x128xbf16, #tpu.memory_space<vmem>>, %arg10: memref<1x128xf32, #tpu.memory_space<vmem>>, %arg11: memref<1x1x128xf32, #tpu.memory_space<vmem>>, %arg12: memref<1x256xf32, #tpu.memory_space<vmem>>) attributes {dimension_semantics = [#tpu.dimension_semantics<parallel>, #tpu.dimension_semantics<arbitrary>], iteration_bounds = array<i64: 2, 1>, scalar_prefetch = 0 : i64, scratch_operands = 1 : i64, tpu.core_type = #tpu.core_type<tc>, window_params = [{transform_indices = @transform_0, window_bounds = array<i64: 1, 16, 8>}, {pipeline_mode = #tpu.pipeline_mode<synchronous>, transform_indices = @transform_1, window_bounds = array<i64: 8, 64>}, {pipeline_mode = #tpu.pipeline_mode<synchronous>, transform_indices = @transform_2, window_bounds = array<i64: 1, 64>}, {pipeline_mode = #tpu.pipeline_mode<synchronous>, transform_indices = @transform_3, window_bounds = array<i64: 64, 128>}, {pipeline_mode = #tpu.pipeline_mode<synchronous>, transform_indices = @transform_4, window_bounds = array<i64: 1, 128>}, {pipeline_mode = #tpu.pipeline_mode<synchronous>, transform_indices = @transform_5, window_bounds = array<i64: 128, 256>}, {pipeline_mode = #tpu.pipeline_mode<synchronous>, transform_indices = @transform_6, window_bounds = array<i64: 1, 256>}, {pipeline_mode = #tpu.pipeline_mode<synchronous>, transform_indices = @transform_7, window_bounds = array<i64: 256, 128>}, {pipeline_mode = #tpu.pipeline_mode<synchronous>, transform_indices = @transform_8, window_bounds = array<i64: 1, 128>}, {transform_indices = @transform_9, window_bounds = array<i64: 1, 1, 128>}]} {
    %c0_i32 = arith.constant 0 : i32
    %0 = arith.cmpi eq, %arg1, %c0_i32 : i32
    %1 = arith.extui %0 : i1 to i32
    %c0_i32_0 = arith.constant 0 : i32
    %2 = arith.cmpi ne, %1, %c0_i32_0 : i32
    scf.if %2 {
      %cst_27 = arith.constant 0xFF800000 : f32
      %37 = vector.broadcast %cst_27 : f32 to vector<1x256xf32>
      %c0_28 = arith.constant 0 : index
      %c0_29 = arith.constant 0 : index
      %38 = vector.load %arg12[%c0_28, %c0_29] : memref<1x256xf32, #tpu.memory_space<vmem>>, vector<1x256xf32>
      tpu.vector_store %arg12[%c0_28, %c0_29], %37 {strides = array<i32>} : memref<1x256xf32, #tpu.memory_space<vmem>>, vector<1x256xf32>,
    } else {
    }
    %c0 = arith.constant 0 : index
    %c0_1 = arith.constant 0 : index
    %c0_2 = arith.constant 0 : index
    %3 = vector.load %arg2[%c0, %c0_1, %c0_2] : memref<1x16x8xf32, #tpu.memory_space<vmem>>, vector<1x16x8xf32>
    %4 = vector.shape_cast %3 : vector<1x16x8xf32> to vector<16x8xf32>
    %5 = arith.truncf %4 : vector<16x8xf32> to vector<16x8xbf16>
    %c0_3 = arith.constant 0 : index
    %c0_4 = arith.constant 0 : index
    %6 = vector.load %arg3[%c0_3, %c0_4] : memref<8x64xbf16, #tpu.memory_space<vmem>>, vector<8x64xbf16>
    %cst = arith.constant dense<0.000000e+00> : vector<16x64xf32>
    %7 = tpu.matmul %5, %6, %cst {dimension_numbers = #tpu.dot_dimension_numbers<[1], [0], [0], [1], [0, 0, 1, 1], [], []>} : vector<16x8xbf16>, vector<8x64xbf16>, vector<16x64xf32> -> vector<16x64xf32>
    %c0_5 = arith.constant 0 : index
    %c0_6 = arith.constant 0 : index
    %8 = vector.load %arg4[%c0_5, %c0_6] : memref<1x64xf32, #tpu.memory_space<vmem>>, vector<1x64xf32>
    %9 = vector.broadcast %8 : vector<1x64xf32> to vector<16x64xf32>
    %10 = arith.addf %7, %9 : vector<16x64xf32>
    %cst_7 = arith.constant 0.000000e+00 : f32
    %11 = vector.broadcast %cst_7 : f32 to vector<16x64xf32>
    %12 = arith.maximumf %10, %11 : vector<16x64xf32>
    %13 = arith.truncf %12 : vector<16x64xf32> to vector<16x64xbf16>
    %c0_8 = arith.constant 0 : index
    %c0_9 = arith.constant 0 : index
    %14 = vector.load %arg5[%c0_8, %c0_9] : memref<64x128xbf16, #tpu.memory_space<vmem>>, vector<64x128xbf16>
    %cst_10 = arith.constant dense<0.000000e+00> : vector<16x128xf32>
    %15 = tpu.matmul %13, %14, %cst_10 {dimension_numbers = #tpu.dot_dimension_numbers<[1], [0], [0], [1], [0, 0, 1, 1], [], []>} : vector<16x64xbf16>, vector<64x128xbf16>, vector<16x128xf32> -> vector<16x128xf32>
    %c0_11 = arith.constant 0 : index
    %c0_12 = arith.constant 0 : index
    %16 = vector.load %arg6[%c0_11, %c0_12] : memref<1x128xf32, #tpu.memory_space<vmem>>, vector<1x128xf32>
    %17 = vector.broadcast %16 : vector<1x128xf32> to vector<16x128xf32>
    %18 = arith.addf %15, %17 : vector<16x128xf32>
    %cst_13 = arith.constant 0.000000e+00 : f32
    %19 = vector.broadcast %cst_13 : f32 to vector<16x128xf32>
    %20 = arith.maximumf %18, %19 : vector<16x128xf32>
    %21 = arith.truncf %20 : vector<16x128xf32> to vector<16x128xbf16>
    %c0_14 = arith.constant 0 : index
    %c0_15 = arith.constant 0 : index
    %22 = vector.load %arg7[%c0_14, %c0_15] : memref<128x256xbf16, #tpu.memory_space<vmem>>, vector<128x256xbf16>
    %cst_16 = arith.constant dense<0.000000e+00> : vector<16x256xf32>
    %23 = tpu.matmul %21, %22, %cst_16 {dimension_numbers = #tpu.dot_dimension_numbers<[1], [0], [0], [1], [0, 0, 1, 1], [], []>} : vector<16x128xbf16>, vector<128x256xbf16>, vector<16x256xf32> -> vector<16x256xf32>
    %c0_17 = arith.constant 0 : index
    %c0_18 = arith.constant 0 : index
    %24 = vector.load %arg8[%c0_17, %c0_18] : memref<1x256xf32, #tpu.memory_space<vmem>>, vector<1x256xf32>
    %25 = vector.broadcast %24 : vector<1x256xf32> to vector<16x256xf32>
    %26 = arith.addf %23, %25 : vector<16x256xf32>
    %cst_19 = arith.constant 0.000000e+00 : f32
    %27 = vector.broadcast %cst_19 : f32 to vector<16x256xf32>
    %28 = arith.maximumf %26, %27 : vector<16x256xf32>
    %29 = vector.shape_cast %28 : vector<16x256xf32> to vector<1x16x256xf32>
    %c0_20 = arith.constant 0 : index
    %c0_21 = arith.constant 0 : index
    %30 = vector.load %arg12[%c0_20, %c0_21] : memref<1x256xf32, #tpu.memory_space<vmem>>, vector<1x256xf32>
    %cst_22 = arith.constant dense<0xFF800000> : vector<1x256xf32>
    %31 = vector.multi_reduction <maximumf>, %29, %cst_22 [1] : vector<1x16x256xf32> to vector<1x256xf32>
    %32 = arith.maximumf %30, %31 : vector<1x256xf32>
    %c0_23 = arith.constant 0 : index
    %c0_24 = arith.constant 0 : index
    %33 = vector.load %arg12[%c0_23, %c0_24] : memref<1x256xf32, #tpu.memory_space<vmem>>, vector<1x256xf32>
    tpu.vector_store %arg12[%c0_23, %c0_24], %32 {strides = array<i32>} : memref<1x256xf32, #tpu.memory_space<vmem>>, vector<1x256xf32>,
    %c0_i32_25 = arith.constant 0 : i32
    %34 = arith.cmpi eq, %arg1, %c0_i32_25 : i32
    %35 = arith.extui %34 : i1 to i32
    %c0_i32_26 = arith.constant 0 : i32
    %36 = arith.cmpi ne, %35, %c0_i32_26 : i32
    scf.if %36 {
      %c0_27 = arith.constant 0 : index
      %c0_28 = arith.constant 0 : index
      %37 = vector.load %arg12[%c0_27, %c0_28] : memref<1x256xf32, #tpu.memory_space<vmem>>, vector<1x256xf32>
      %38 = arith.truncf %37 : vector<1x256xf32> to vector<1x256xbf16>
      %c0_29 = arith.constant 0 : index
      %c0_30 = arith.constant 0 : index
      %39 = vector.load %arg9[%c0_29, %c0_30] : memref<256x128xbf16, #tpu.memory_space<vmem>>, vector<256x128xbf16>
      %cst_31 = arith.constant dense<0.000000e+00> : vector<1x128xf32>
      %40 = tpu.matmul %38, %39, %cst_31 {dimension_numbers = #tpu.dot_dimension_numbers<[1], [0], [0], [1], [0, 0, 1, 1], [], []>} : vector<1x256xbf16>, vector<256x128xbf16>, vector<1x128xf32> -> vector<1x128xf32>
      %c0_32 = arith.constant 0 : index
      %c0_33 = arith.constant 0 : index
      %41 = vector.load %arg10[%c0_32, %c0_33] : memref<1x128xf32, #tpu.memory_space<vmem>>, vector<1x128xf32>
      %42 = arith.addf %40, %41 : vector<1x128xf32>
      %43 = vector.shape_cast %42 : vector<1x128xf32> to vector<1x1x128xf32>
      %c0_34 = arith.constant 0 : index
      %c0_35 = arith.constant 0 : index
      %c0_36 = arith.constant 0 : index
      %44 = vector.load %arg11[%c0_34, %c0_35, %c0_36] : memref<1x1x128xf32, #tpu.memory_space<vmem>>, vector<1x1x128xf32>
      tpu.vector_store %arg11[%c0_34, %c0_35, %c0_36], %43 {strides = array<i32>} : memref<1x1x128xf32, #tpu.memory_space<vmem>>, vector<1x1x128xf32>,
    } else {
    }
    return
  }
  func.func @transform_0(%arg0: i32, %arg1: i32) -> (i32, i32, i32) {
    %c0_i32 = arith.constant 0 : i32
    %c0_i32_0 = arith.constant 0 : i32
    return %arg0, %arg1, %c0_i32 : i32, i32, i32
  }
  func.func @transform_1(%arg0: i32, %arg1: i32) -> (i32, i32) {
    %c0_i32 = arith.constant 0 : i32
    %c0_i32_0 = arith.constant 0 : i32
    %c0_i32_1 = arith.constant 0 : i32
    return %c0_i32, %c0_i32_0 : i32, i32
  }
  func.func @transform_2(%arg0: i32, %arg1: i32) -> (i32, i32) {
    %c0_i32 = arith.constant 0 : i32
    %c0_i32_0 = arith.constant 0 : i32
    %c0_i32_1 = arith.constant 0 : i32
    return %c0_i32, %c0_i32_0 : i32, i32
  }
  func.func @transform_3(%arg0: i32, %arg1: i32) -> (i32, i32) {
    %c0_i32 = arith.constant 0 : i32
    %c0_i32_0 = arith.constant 0 : i32
    %c0_i32_1 = arith.constant 0 : i32
    return %c0_i32, %c0_i32_0 : i32, i32
  }
  func.func @transform_4(%arg0: i32, %arg1: i32) -> (i32, i32) {
    %c0_i32 = arith.constant 0 : i32
    %c0_i32_0 = arith.constant 0 : i32
    %c0_i32_1 = arith.constant 0 : i32
    return %c0_i32, %c0_i32_0 : i32, i32
  }
  func.func @transform_5(%arg0: i32, %arg1: i32) -> (i32, i32) {
    %c0_i32 = arith.constant 0 : i32
    %c0_i32_0 = arith.constant 0 : i32
    %c0_i32_1 = arith.constant 0 : i32
    return %c0_i32, %c0_i32_0 : i32, i32
  }
  func.func @transform_6(%arg0: i32, %arg1: i32) -> (i32, i32) {
    %c0_i32 = arith.constant 0 : i32
    %c0_i32_0 = arith.constant 0 : i32
    %c0_i32_1 = arith.constant 0 : i32
    return %c0_i32, %c0_i32_0 : i32, i32
  }
  func.func @transform_7(%arg0: i32, %arg1: i32) -> (i32, i32) {
    %c0_i32 = arith.constant 0 : i32
    %c0_i32_0 = arith.constant 0 : i32
    %c0_i32_1 = arith.constant 0 : i32
    return %c0_i32, %c0_i32_0 : i32, i32
  }
  func.func @transform_8(%arg0: i32, %arg1: i32) -> (i32, i32) {
    %c0_i32 = arith.constant 0 : i32
    %c0_i32_0 = arith.constant 0 : i32
    %c0_i32_1 = arith.constant 0 : i32
    return %c0_i32, %c0_i32_0 : i32, i32
  }
  func.func @transform_9(%arg0: i32, %arg1: i32) -> (i32, i32, i32) {
    %c0_i32 = arith.constant 0 : i32
    %c0_i32_0 = arith.constant 0 : i32
    %c0_i32_1 = arith.constant 0 : i32
    return %arg0, %c0_i32, %c0_i32_0 : i32, i32, i32
  }
}

</mosaic_0001>

<llo_original>
// kernel: point_anchor_net.1
$region0: #{point_anchor_net.1}
  #allocation0 [shape = 'u32[]', space=smem, size = 0x4, offset = 0x4, fixed_abs, tag = 'smem constant byte address 0x4 - core index']
  #allocation1 [shape = 'u32[144,128]{1,0:T(1,128)}', space=vmem, size = 0x12000, scoped, tag = 'internal scratch']
  #allocation2 [shape = 'f32[1,256]{1,0:T(1,128)}', space=vmem, size = 0x400, scoped, tag = 'scratch operand']
  %s0 = inlined_call_operand.vmem [shape: f32[2,16,8], index: 0, kind: input, shape index: {}]
  %s1 = inlined_call_operand.vmem [shape: bf16[8,64], index: 1, kind: input, shape index: {}]
  %s2 = inlined_call_operand.vmem [shape: f32[1,64], index: 2, kind: input, shape index: {}]
  %s3 = inlined_call_operand.vmem [shape: bf16[64,128], index: 3, kind: input, shape index: {}]
  %s4 = inlined_call_operand.vmem [shape: f32[1,128], index: 4, kind: input, shape index: {}]
  %s5 = inlined_call_operand.vmem [shape: bf16[128,256], index: 5, kind: input, shape index: {}]
  %s6 = inlined_call_operand.vmem [shape: f32[1,256], index: 6, kind: input, shape index: {}]
  %s7 = inlined_call_operand.vmem [shape: bf16[256,128], index: 7, kind: input, shape index: {}]
  %s8 = inlined_call_operand.vmem [shape: f32[1,128], index: 8, kind: input, shape index: {}]
  %s9 = inlined_call_operand.hbm [shape: f32[2,1,128], index: 9, kind: output, shape index: {}]
  %s10 = sld [smem:[#allocation0]]
  $region77: #{point_anchor_net.1} parent=0
    _
  %s12 = ssub.s32 1, %s10
  %s13 = scalar_select 0, %s12, %s10
  $region1: #{point_anchor_net.1} parent=0
    #allocation3 [shape = 'u8[1024]{0}', space=vmem, size = 0x400, scoped, tag = 'output window, operand 0']
    #allocation4 [shape = 's32[2]{0}', space=sflag, size = 0x8, scoped, tag = 'scoped memory for point_anchor_net.1']
    %14 = vsyncpa [#allocation4], 0
    %s15 = scalar_lea.sflag [#allocation4], 1
    %16 = vsyncpa %s15, 0
    loop: start=0, step=1, limit=4
    $region2: #{point_anchor_net.1} parent=1 // loop_pre_header
      _
    $region3: #{point_anchor_net.1} parent=1 // loop_header
      %s18 = sphi 0, %s22
      %p19 = scmp.ge.s32.totalorder %s18, 4
      %s25 = sphi 0, %s37
      %s26 = sphi 0, %s33
      %s27 = sphi 0, %s25
      %s28 = sphi 0, %s26
      %s29 = sphi 0, %s27
      %s30 = sphi 0, %s28
      %s42 = sphi 0, %s44
      %s45 = sphi 0, %s42
      %s46 = sphi 0, %s45
      %s62 = sphi 0, %s46
      %s66 = sphi 0, %s66
      %s68 = sphi 0, %s66
      %s69 = sphi 0, %s68
      %s83 = sphi 0, %s69
      %s87 = sphi 0, %s87
      %s89 = sphi 0, %s87
      %s90 = sphi 0, %s89
      %s104 = sphi 0, %s90
      %s108 = sphi 0, %s108
      %s110 = sphi 0, %s108
      %s111 = sphi 0, %s110
      %s125 = sphi 0, %s111
      %s129 = sphi 0, %s129
      %s131 = sphi 0, %s129
      %s132 = sphi 0, %s131
      %s146 = sphi 0, %s132
      %s150 = sphi 0, %s150
      %s152 = sphi 0, %s150
      %s153 = sphi 0, %s152
      %s167 = sphi 0, %s153
      %s171 = sphi 0, %s171
      %s173 = sphi 0, %s171
      %s174 = sphi 0, %s173
      %s188 = sphi 0, %s174
      %s192 = sphi 0, %s192
      %s194 = sphi 0, %s192
      %s195 = sphi 0, %s194
      %s209 = sphi 0, %s195
      %s213 = sphi 0, %s213
      %s215 = sphi 0, %s213
      %s216 = sphi 0, %s215
      %s230 = sphi 0, %s216
      %s236 = sphi 0, %s238
      %s239 = sphi 0, %s236
      %s240 = sphi 0, %s239
      %s256 = sphi 0, %s240
    $region4: #{point_anchor_net.1} parent=1 // loop_header_branch
      %21 = sbr.rel (%p19) target = $region8
    $region5: #{point_anchor_net.1} parent=1 // loop_body
      %s23 = ssub.s32 %s18, 1
      %s24 = ssub.s32 %s18, 2
      %s31 = sadd.s32 1, %s26
      %p32 = scmp.ge.s32.totalorder %s31, 1
      %s33 = scalar_select %p32, 0, %s31
      %s34 = sadd.s32 1, %s25
      %s35 = scalar_select %p32, %s34, %s25
      %p36 = scmp.ge.s32.totalorder %s35, 2
      %s37 = scalar_select %p36, 0, %s35
      %s38 = ssub.s32 %s25, %s37
      %s39 = ssub.s32 %s26, %s33
      %s40 = sor.u32 %s38, %s39
      %p41 = scmp.eq.s32.totalorder %s40, 0
      %s43 = sadd.s32 %s42, 1
      %s44 = scalar_select %p41, %s42, %s43
      %p47 = pneg %p41
      %p48 = scmp.eq.s32.totalorder %s18, 1
      %p49 = por %p47, %p48
      %p50 = scmp.ne.s32.totalorder %s42, %s45
      %p51 = scmp.eq.s32.totalorder %s18, 0
      %p52 = por %p50, %p51
      %p53 = scmp.ne.s32.totalorder %s42, %s45
      %p54 = scmp.eq.s32.totalorder %s23, 1
      %p55 = por %p53, %p54
      %p56 = scmp.ne.s32.totalorder %s45, %s46
      %p57 = scmp.eq.s32.totalorder %s23, 0
      %p58 = por %p56, %p57
      %p59 = scmp.ne.s32.totalorder %s45, %s46
      %p60 = scmp.eq.s32.totalorder %s24, 1
      %p61 = por %p59, %p60
      %p63 = scmp.ne.s32.totalorder %s46, %s62
      %p64 = scmp.eq.s32.totalorder %s24, 0
      %p65 = por %p63, %p64
      %s67 = sadd.s32 %s66, 1
      %p70 = scmp.eq.s32.totalorder %s18, 1
      %p71 = scmp.ne.s32.totalorder %s66, %s68
      %p72 = scmp.eq.s32.totalorder %s18, 0
      %p73 = por %p71, %p72
      %p74 = scmp.ne.s32.totalorder %s66, %s68
      %p75 = scmp.eq.s32.totalorder %s23, 1
      %p76 = por %p74, %p75
      %p77 = scmp.ne.s32.totalorder %s68, %s69
      %p78 = scmp.eq.s32.totalorder %s23, 0
      %p79 = por %p77, %p78
      %p80 = scmp.ne.s32.totalorder %s68, %s69
      %p81 = scmp.eq.s32.totalorder %s24, 1
      %p82 = por %p80, %p81
      %p84 = scmp.ne.s32.totalorder %s69, %s83
      %p85 = scmp.eq.s32.totalorder %s24, 0
      %p86 = por %p84, %p85
      %s88 = sadd.s32 %s87, 1
      %p91 = scmp.eq.s32.totalorder %s18, 1
      %p92 = scmp.ne.s32.totalorder %s87, %s89
      %p93 = scmp.eq.s32.totalorder %s18, 0
      %p94 = por %p92, %p93
      %p95 = scmp.ne.s32.totalorder %s87, %s89
      %p96 = scmp.eq.s32.totalorder %s23, 1
      %p97 = por %p95, %p96
      %p98 = scmp.ne.s32.totalorder %s89, %s90
      %p99 = scmp.eq.s32.totalorder %s23, 0
      %p100 = por %p98, %p99
      %p101 = scmp.ne.s32.totalorder %s89, %s90
      %p102 = scmp.eq.s32.totalorder %s24, 1
      %p103 = por %p101, %p102
      %p105 = scmp.ne.s32.totalorder %s90, %s104
      %p106 = scmp.eq.s32.totalorder %s24, 0
      %p107 = por %p105, %p106
      %s109 = sadd.s32 %s108, 1
      %p112 = scmp.eq.s32.totalorder %s18, 1
      %p113 = scmp.ne.s32.totalorder %s108, %s110
      %p114 = scmp.eq.s32.totalorder %s18, 0
      %p115 = por %p113, %p114
      %p116 = scmp.ne.s32.totalorder %s108, %s110
      %p117 = scmp.eq.s32.totalorder %s23, 1
      %p118 = por %p116, %p117
      %p119 = scmp.ne.s32.totalorder %s110, %s111
      %p120 = scmp.eq.s32.totalorder %s23, 0
      %p121 = por %p119, %p120
      %p122 = scmp.ne.s32.totalorder %s110, %s111
      %p123 = scmp.eq.s32.totalorder %s24, 1
      %p124 = por %p122, %p123
      %p126 = scmp.ne.s32.totalorder %s111, %s125
      %p127 = scmp.eq.s32.totalorder %s24, 0
      %p128 = por %p126, %p127
      %s130 = sadd.s32 %s129, 1
      %p133 = scmp.eq.s32.totalorder %s18, 1
      %p134 = scmp.ne.s32.totalorder %s129, %s131
      %p135 = scmp.eq.s32.totalorder %s18, 0
      %p136 = por %p134, %p135
      %p137 = scmp.ne.s32.totalorder %s129, %s131
      %p138 = scmp.eq.s32.totalorder %s23, 1
      %p139 = por %p137, %p138
      %p140 = scmp.ne.s32.totalorder %s131, %s132
      %p141 = scmp.eq.s32.totalorder %s23, 0
      %p142 = por %p140, %p141
      %p143 = scmp.ne.s32.totalorder %s131, %s132
      %p144 = scmp.eq.s32.totalorder %s24, 1
      %p145 = por %p143, %p144
      %p147 = scmp.ne.s32.totalorder %s132, %s146
      %p148 = scmp.eq.s32.totalorder %s24, 0
      %p149 = por %p147, %p148
      %s151 = sadd.s32 %s150, 1
      %p154 = scmp.eq.s32.totalorder %s18, 1
      %p155 = scmp.ne.s32.totalorder %s150, %s152
      %p156 = scmp.eq.s32.totalorder %s18, 0
      %p157 = por %p155, %p156
      %p158 = scmp.ne.s32.totalorder %s150, %s152
      %p159 = scmp.eq.s32.totalorder %s23, 1
      %p160 = por %p158, %p159
      %p161 = scmp.ne.s32.totalorder %s152, %s153
      %p162 = scmp.eq.s32.totalorder %s23, 0
      %p163 = por %p161, %p162
      %p164 = scmp.ne.s32.totalorder %s152, %s153
      %p165 = scmp.eq.s32.totalorder %s24, 1
      %p166 = por %p164, %p165
      %p168 = scmp.ne.s32.totalorder %s153, %s167
      %p169 = scmp.eq.s32.totalorder %s24, 0
      %p170 = por %p168, %p169
      %s172 = sadd.s32 %s171, 1
      %p175 = scmp.eq.s32.totalorder %s18, 1
      %p176 = scmp.ne.s32.totalorder %s171, %s173
      %p177 = scmp.eq.s32.totalorder %s18, 0
      %p178 = por %p176, %p177
      %p179 = scmp.ne.s32.totalorder %s171, %s173
      %p180 = scmp.eq.s32.totalorder %s23, 1
      %p181 = por %p179, %p180
      %p182 = scmp.ne.s32.totalorder %s173, %s174
      %p183 = scmp.eq.s32.totalorder %s23, 0
      %p184 = por %p182, %p183
      %p185 = scmp.ne.s32.totalorder %s173, %s174
      %p186 = scmp.eq.s32.totalorder %s24, 1
      %p187 = por %p185, %p186
      %p189 = scmp.ne.s32.totalorder %s174, %s188
      %p190 = scmp.eq.s32.totalorder %s24, 0
      %p191 = por %p189, %p190
      %s193 = sadd.s32 %s192, 1
      %p196 = scmp.eq.s32.totalorder %s18, 1
      %p197 = scmp.ne.s32.totalorder %s192, %s194
      %p198 = scmp.eq.s32.totalorder %s18, 0
      %p199 = por %p197, %p198
      %p200 = scmp.ne.s32.totalorder %s192, %s194
      %p201 = scmp.eq.s32.totalorder %s23, 1
      %p202 = por %p200, %p201
      %p203 = scmp.ne.s32.totalorder %s194, %s195
      %p204 = scmp.eq.s32.totalorder %s23, 0
      %p205 = por %p203, %p204
      %p206 = scmp.ne.s32.totalorder %s194, %s195
      %p207 = scmp.eq.s32.totalorder %s24, 1
      %p208 = por %p206, %p207
      %p210 = scmp.ne.s32.totalorder %s195, %s209
      %p211 = scmp.eq.s32.totalorder %s24, 0
      %p212 = por %p210, %p211
      %s214 = sadd.s32 %s213, 1
      %p217 = scmp.eq.s32.totalorder %s18, 1
      %p218 = scmp.ne.s32.totalorder %s213, %s215
      %p219 = scmp.eq.s32.totalorder %s18, 0
      %p220 = por %p218, %p219
      %p221 = scmp.ne.s32.totalorder %s213, %s215
      %p222 = scmp.eq.s32.totalorder %s23, 1
      %p223 = por %p221, %p222
      %p224 = scmp.ne.s32.totalorder %s215, %s216
      %p225 = scmp.eq.s32.totalorder %s23, 0
      %p226 = por %p224, %p225
      %p227 = scmp.ne.s32.totalorder %s215, %s216
      %p228 = scmp.eq.s32.totalorder %s24, 1
      %p229 = por %p227, %p228
      %p231 = scmp.ne.s32.totalorder %s216, %s230
      %p232 = scmp.eq.s32.totalorder %s24, 0
      %p233 = por %p231, %p232
      %s234 = ssub.s32 %s25, %s37
      %p235 = scmp.eq.s32.totalorder %s234, 0
      %s237 = sadd.s32 %s236, 1
      %s238 = scalar_select %p235, %s236, %s237
      %p241 = pneg %p235
      %p242 = scmp.eq.s32.totalorder %s18, 1
      %p243 = por %p241, %p242
      %p244 = scmp.ne.s32.totalorder %s236, %s239
      %p245 = scmp.eq.s32.totalorder %s18, 0
      %p246 = por %p244, %p245
      %p247 = scmp.ne.s32.totalorder %s236, %s239
      %p248 = scmp.eq.s32.totalorder %s23, 1
      %p249 = por %p247, %p248
      %p250 = scmp.ne.s32.totalorder %s239, %s240
      %p251 = scmp.eq.s32.totalorder %s23, 0
      %p252 = por %p250, %p251
      %p253 = scmp.ne.s32.totalorder %s239, %s240
      %p254 = scmp.eq.s32.totalorder %s24, 1
      %p255 = por %p253, %p254
      %p257 = scmp.ne.s32.totalorder %s240, %s256
      %p258 = scmp.eq.s32.totalorder %s24, 0
      %p259 = por %p257, %p258
      %p260 = scmp.le.s32.totalorder 1, %s18
      %p261 = scmp.lt.s32.totalorder %s18, 3
      %p262 = pnand %p260, %p261
      %p263 = pneg %p262
      // Predicated region
      $region9: #{point_anchor_net.1} parent=5 // pred_check
        _
      $region10: #{point_anchor_net.1} parent=5 // pred_check_branch
        %265 = sbr.rel (%p262) target = $region12
      $region11: #{point_anchor_net.1} parent=5 // pred_region
        %s266 = ssub.s32 %s18, 1
        // Predicated region
        $region13: #{point_anchor_net.1} parent=11 // pred_check
          %p267 = pneg %p79
        $region14: #{point_anchor_net.1} parent=11 // pred_check_branch
          %269 = sbr.rel (%p267) target = $region16
        $region15: #{point_anchor_net.1} parent=11 // pred_region
          _
        $region16: #{point_anchor_net.1} parent=11 // pred_fallthru
          _
        // Predicated region
        $region17: #{point_anchor_net.1} parent=11 // pred_check
          %p270 = pneg %p100
        $region18: #{point_anchor_net.1} parent=11 // pred_check_branch
          %272 = sbr.rel (%p270) target = $region20
        $region19: #{point_anchor_net.1} parent=11 // pred_region
          _
        $region20: #{point_anchor_net.1} parent=11 // pred_fallthru
          _
        // Predicated region
        $region21: #{point_anchor_net.1} parent=11 // pred_check
          %p273 = pneg %p121
        $region22: #{point_anchor_net.1} parent=11 // pred_check_branch
          %275 = sbr.rel (%p273) target = $region24
        $region23: #{point_anchor_net.1} parent=11 // pred_region
          _
        $region24: #{point_anchor_net.1} parent=11 // pred_fallthru
          _
        // Predicated region
        $region25: #{point_anchor_net.1} parent=11 // pred_check
          %p276 = pneg %p142
        $region26: #{point_anchor_net.1} parent=11 // pred_check_branch
          %278 = sbr.rel (%p276) target = $region28
        $region27: #{point_anchor_net.1} parent=11 // pred_region
          _
        $region28: #{point_anchor_net.1} parent=11 // pred_fallthru
          _
        // Predicated region
        $region29: #{point_anchor_net.1} parent=11 // pred_check
          %p279 = pneg %p163
        $region30: #{point_anchor_net.1} parent=11 // pred_check_branch
          %281 = sbr.rel (%p279) target = $region32
        $region31: #{point_anchor_net.1} parent=11 // pred_region
          _
        $region32: #{point_anchor_net.1} parent=11 // pred_fallthru
          _
        // Predicated region
        $region33: #{point_anchor_net.1} parent=11 // pred_check
          %p282 = pneg %p184
        $region34: #{point_anchor_net.1} parent=11 // pred_check_branch
          %284 = sbr.rel (%p282) target = $region36
        $region35: #{point_anchor_net.1} parent=11 // pred_region
          _
        $region36: #{point_anchor_net.1} parent=11 // pred_fallthru
          _
        // Predicated region
        $region37: #{point_anchor_net.1} parent=11 // pred_check
          %p285 = pneg %p205
        $region38: #{point_anchor_net.1} parent=11 // pred_check_branch
          %287 = sbr.rel (%p285) target = $region40
        $region39: #{point_anchor_net.1} parent=11 // pred_region
          _
        $region40: #{point_anchor_net.1} parent=11 // pred_fallthru
          _
        // Predicated region
        $region41: #{point_anchor_net.1} parent=11 // pred_check
          %p288 = pneg %p226
        $region42: #{point_anchor_net.1} parent=11 // pred_check_branch
          %290 = sbr.rel (%p288) target = $region44
        $region43: #{point_anchor_net.1} parent=11 // pred_region
          _
        $region44: #{point_anchor_net.1} parent=11 // pred_fallthru
          _
      $region12: #{point_anchor_net.1} parent=5 // pred_fallthru
        _
      %p291 = scmp.lt.s32.totalorder %s18, 2
      // Predicated region
      $region45: #{point_anchor_net.1} parent=5 // pred_check
        %p292 = pneg %p291
      $region46: #{point_anchor_net.1} parent=5 // pred_check_branch
        %294 = sbr.rel (%p292) target = $region48
      $region47: #{point_anchor_net.1} parent=5 // pred_region
        // Predicated region
        $region49: #{point_anchor_net.1} parent=47 // pred_check
          %p295 = pneg %p52
        $region50: #{point_anchor_net.1} parent=47 // pred_check_branch
          %297 = sbr.rel (%p295) target = $region52
        $region51: #{point_anchor_net.1} parent=47 // pred_region
          %s298 = smul.u32 2, %s26
          %p299 = scmp.lt.s32.totalorder %s25, 1
          %s300 = scalar_select %p299, %s25, 1
          %p301 = scmp.lt.s32.totalorder %s298, 1
          %s302 = scalar_select %p301, %s298, 1
          %s303 = smul.addr %s300, 2
          %s304 = sadd.s32 %s302, %s303
          %s305 = smul.addr %s304, 8
          %s306 = scalar_lea.vmem %s0, %s305
          %s307 = smul.u32 2, %s26
        $region52: #{point_anchor_net.1} parent=47 // pred_fallthru
          _
      $region48: #{point_anchor_net.1} parent=5 // pred_fallthru
        _
      %p308 = scmp.le.s32.totalorder 1, %s18
      %p309 = scmp.lt.s32.totalorder %s18, 3
      %p310 = pnand %p308, %p309
      %p311 = pneg %p310
      // Predicated region
      $region53: #{point_anchor_net.1} parent=5 // pred_check
        _
      $region54: #{point_anchor_net.1} parent=5 // pred_check_branch
        %313 = sbr.rel (%p310) target = $region56
      $region55: #{point_anchor_net.1} parent=5 // pred_region
        %s314 = ssub.s32 %s18, 1
        %s315 = smul.u32 2, %s28
        %p316 = scmp.lt.s32.totalorder %s27, 1
        %s317 = scalar_select %p316, %s27, 1
        %p318 = scmp.lt.s32.totalorder %s315, 1
        %s319 = scalar_select %p318, %s315, 1
        %s320 = smul.addr %s317, 2
        %s321 = sadd.s32 %s319, %s320
        %s322 = smul.addr %s321, 8
        %s323 = scalar_lea.vmem %s0, %s322
        %p324 = pneg %p58
        %p325 = pneg %p55
        %p326 = pneg %p79
        %p327 = pneg %p76
        %p328 = pneg %p100
        %p329 = pneg %p97
        %p330 = pneg %p121
        %p331 = pneg %p118
        %p332 = pneg %p142
        %p333 = pneg %p139
        %p334 = pneg %p163
        %p335 = pneg %p160
        %p336 = pneg %p184
        %p337 = pneg %p181
        %p338 = pneg %p205
        %p339 = pneg %p202
        %p340 = pneg %p226
        %p341 = pneg %p223
        %p342 = pneg %p252
        %p343 = pneg %p249
        %s344 = sand.u32 %s239, 1
        %s345 = scalar_lea.sflag [#allocation4], %s344
        %s346 = sand.u32 %s239, 1
        %s347 = scalar_lea.vmem [#allocation3], %s346
        %s348 = smul.u32 2, %s28
        %p349 = scmp.lt.s32.totalorder %s27, 1
        %s350 = scalar_select %p349, %s27, 1
        %p351 = scmp.lt.s32.totalorder %s348, 1
        %s352 = scalar_select %p351, %s348, 1
        %s353 = smul.addr %s350, 2
        %s354 = sadd.s32 %s352, %s353
        %s355 = smul.addr %s354, 8
        %s356 = scalar_lea.vmem %s0, %s355
        %s357 = smul.u32 2, %s28
        %p359 = scmp.eq.s32.totalorder %s28, 0
        // Predicated region
        $region57: #{point_anchor_net.1} parent=55 // pred_check
          %p360 = pneg %p359
        $region58: #{point_anchor_net.1} parent=55 // pred_check_branch
          %362 = sbr.rel (%p360) target = $region60
        $region59: #{point_anchor_net.1} parent=55 // pred_region
          %v363 = vlaneseq
          %vm364 = vcmp.ge.s32.totalorder %v363, 0
          %vm365 = vcmp.lt.s32.totalorder %v363, 256
          %vm366 = vmand %vm364, %vm365
          %367 = vst.msk [vmem:[#allocation2] sm:$0x3] %vm366, -inf
        $region60: #{point_anchor_net.1} parent=55 // pred_fallthru
          _
        %v368 = vld [vmem:[%s356] sm:$0xff]
        %v369 = vld [vmem:[%s356 + $0x8] sm:$0xff]
        %v370 = vpack.c.bf16 %v369, %v368
        %v371 = vld [vmem:[%s1] sm:$0xf]
        %v372 = vld [vmem:[%s2] sm:$0x1]
        %v374 = vlaneseq
        %v375 = vshrl.u32 %v374, 7
        %v376 = vsub.s32 0, %v375
        %v377 = vrot.slane %v372, %v376
        %vm379 = vcmask 64512
        %v381 = vsel %vm379, %v370, 0
        %vm383 = vcmask 1043456
        %v385 = vsel %vm383, %v371, 0
        %387 = vmatprep.subr.bf16.mxu0 0
        %388 = vmatpush1.bf16.msra.mxu0 0
        %389 = vmatprep.subr.bf16.mxu0 0
        %390 = vmatpush1.bf16.msra.mxu0 0
        %391 = vmatprep.subr.bf16.mxu0 0
        %392 = vmatpush1.bf16.msra.mxu0 0
        %393 = vmatprep.subr.bf16.mxu0 0
        %394 = vmatpush1.bf16.msra.mxu0 0
        %395 = vmatprep.subr.bf16.mxu0 0
        %396 = vmatpush1.bf16.msra.mxu0 0
        %397 = vmatprep.subr.bf16.mxu0 0
        %398 = vmatpush1.bf16.msra.mxu0 0
        %399 = vmatprep.subr.bf16.mxu0 0
        %400 = vmatpush1.bf16.msra.mxu0 0
        %401 = vmatprep.subr.bf16.mxu0 0
        %402 = vmatpush1.bf16.msra.mxu0 %v385
        %403 = vmatprep.subr.bf16.mxu0 0
        %404 = vmatpush2.bf16.msra.mxu0 0
        %405 = vmatprep.subr.bf16.mxu0 0
        %406 = vmatpush2.bf16.msra.mxu0 0
        %407 = vmatprep.subr.bf16.mxu0 0
        %408 = vmatpush2.bf16.msra.mxu0 0
        %409 = vmatprep.subr.bf16.mxu0 0
        %410 = vmatpush2.bf16.msra.mxu0 0
        %411 = vmatprep.subr.bf16.mxu0 0
        %412 = vmatpush2.bf16.msra.mxu0 0
        %413 = vmatprep.subr.bf16.mxu0 0
        %414 = vmatpush2.bf16.msra.mxu0 0
        %415 = vmatprep.subr.bf16.mxu0 0
        %416 = vmatpush2.bf16.msra.mxu0 0
        %417 = vmatprep.subr.bf16.mxu0 0
        %418 = vmatpush2.bf16.msra.mxu0 0
        %419 = vmatprep.mubr.bf16.mxu0 0
        %420 = vmatmul.mubr.bf16.gmra.mxu0 %v381
        %v421 = vpop.f32.mrf.mxu0
        %v422 = vadd.f32 %v377, %v421
        %v423 = vpop.f32.mrf.mxu0
        %v424 = vpop.f32.mrf.mxu0
        %v425 = vadd.f32 %v377, %v424
        %v426 = vpop.f32.mrf.mxu0
        %427 = vdwg.mxu0
        %v428 = vmax.f32 %v422, 0.0
        %v429 = vmax.f32 %v425, 0.0
        %v430 = vpack.c.bf16 %v429, %v428
        %v431 = vld [vmem:[%s3] sm:$0xf]
        %v432 = vld [vmem:[%s3 + $0x4] sm:$0xf]
        %v433 = vld [vmem:[%s3 + $0x8] sm:$0xf]
        %v434 = vld [vmem:[%s3 + $0xc] sm:$0xf]
        %v435 = vld [vmem:[%s3 + $0x10] sm:$0xf]
        %v436 = vld [vmem:[%s3 + $0x14] sm:$0xf]
        %v437 = vld [vmem:[%s3 + $0x18] sm:$0xf]
        %v438 = vld [vmem:[%s3 + $0x1c] sm:$0xf]
        %v439 = vld [vmem:[%s4] sm:$0x1]
        %v441 = vlaneseq
        %v442 = vshrl.u32 %v441, 7
        %v443 = vsub.s32 0, %v442
        %v444 = vrot.slane %v439, %v443
        %v454 = vunpack.c.l.b16 %v431
        %v455 = vunpack.c.l.b16 %v432
        %v456 = vunpack.c.l.b16 %v433
        %v457 = vunpack.c.l.b16 %v434
        %v458 = vunpack.c.l.b16 %v435
        %v459 = vunpack.c.l.b16 %v436
        %v460 = vunpack.c.l.b16 %v437
        %v461 = vunpack.c.l.b16 %v438
        %v462 = vpack.c.b16 %v455, %v454
        %v463 = vpack.c.b16 %v457, %v456
        %v464 = vpack.c.b16 %v459, %v458
        %v465 = vpack.c.b16 %v461, %v460
        %vm470 = vcmask 523264
        %v472 = vsel %vm470, %v430, 0
        %474 = vmatprep.subr.bf16.mxu0 0
        %475 = vmatpush1.bf16.msra.mxu0 0
        %476 = vmatprep.subr.bf16.mxu0 0
        %477 = vmatpush1.bf16.msra.mxu0 0
        %478 = vmatprep.subr.bf16.mxu0 0
        %479 = vmatpush1.bf16.msra.mxu0 0
        %480 = vmatprep.subr.bf16.mxu0 0
        %481 = vmatpush1.bf16.msra.mxu0 0
        %482 = vmatprep.subr.bf16.mxu0 0
        %483 = vmatpush1.bf16.msra.mxu0 %v465
        %484 = vmatprep.subr.bf16.mxu0 0
        %485 = vmatpush1.bf16.msra.mxu0 %v464
        %486 = vmatprep.subr.bf16.mxu0 0
        %487 = vmatpush1.bf16.msra.mxu0 %v463
        %488 = vmatprep.subr.bf16.mxu0 0
        %489 = vmatpush1.bf16.msra.mxu0 %v462
        %490 = vmatprep.subr.bf16.mxu0 0
        %491 = vmatpush2.bf16.msra.mxu0 0
        %492 = vmatprep.subr.bf16.mxu0 0
        %493 = vmatpush2.bf16.msra.mxu0 0
        %494 = vmatprep.subr.bf16.mxu0 0
        %495 = vmatpush2.bf16.msra.mxu0 0
        %496 = vmatprep.subr.bf16.mxu0 0
        %497 = vmatpush2.bf16.msra.mxu0 0
        %498 = vmatprep.subr.bf16.mxu0 0
        %499 = vmatpush2.bf16.msra.mxu0 0
        %500 = vmatprep.subr.bf16.mxu0 0
        %501 = vmatpush2.bf16.msra.mxu0 0
        %502 = vmatprep.subr.bf16.mxu0 0
        %503 = vmatpush2.bf16.msra.mxu0 0
        %504 = vmatprep.subr.bf16.mxu0 0
        %505 = vmatpush2.bf16.msra.mxu0 0
        %506 = vmatprep.mubr.bf16.mxu0 0
        %507 = vmatmul.mubr.bf16.gmra.mxu0 %v472
        %v508 = vpop.f32.mrf.mxu0
        %v509 = vadd.f32 %v444, %v508
        %v510 = vpop.f32.mrf.mxu0
        %v511 = vpop.f32.mrf.mxu0
        %v512 = vadd.f32 %v444, %v511
        %v513 = vpop.f32.mrf.mxu0
        %514 = vdwg.mxu0
        %v515 = vmax.f32 %v509, 0.0
        %v516 = vmax.f32 %v512, 0.0
        %v517 = vpack.c.bf16 %v516, %v515
        %v518 = vld [vmem:[%s5] sm:$0xff]
        %v519 = vld [vmem:[%s5 + $0x8] sm:$0xff]
        %v520 = vld [vmem:[%s5 + $0x10] sm:$0xff]
        %v521 = vld [vmem:[%s5 + $0x18] sm:$0xff]
        %v522 = vld [vmem:[%s5 + $0x20] sm:$0xff]
        %v523 = vld [vmem:[%s5 + $0x28] sm:$0xff]
        %v524 = vld [vmem:[%s5 + $0x30] sm:$0xff]
        %v525 = vld [vmem:[%s5 + $0x38] sm:$0xff]
        %v526 = vld [vmem:[%s5 + $0x40] sm:$0xff]
        %v527 = vld [vmem:[%s5 + $0x48] sm:$0xff]
        %v528 = vld [vmem:[%s5 + $0x50] sm:$0xff]
        %v529 = vld [vmem:[%s5 + $0x58] sm:$0xff]
        %v530 = vld [vmem:[%s5 + $0x60] sm:$0xff]
        %v531 = vld [vmem:[%s5 + $0x68] sm:$0xff]
        %v532 = vld [vmem:[%s5 + $0x70] sm:$0xff]
        %v533 = vld [vmem:[%s5 + $0x78] sm:$0xff]
        %v534 = vld [vmem:[%s6] sm:$0x3]
        %v536 = vlaneseq
        %v537 = vshrl.u32 %v536, 7
        %v538 = vsub.s32 0, %v537
        %v539 = vrot.slane %v534, %v538
        %v540 = vlaneseq
        %v541 = vshrl.u32 %v540, 7
        %v542 = vsub.s32 1, %v541
        %v543 = vrot.slane %v534, %v542
        %v562 = vunpack.c.l.b16 %v518
        %v563 = vunpack.c.h.b16 %v518
        %v564 = vunpack.c.l.b16 %v519
        %v565 = vunpack.c.h.b16 %v519
        %v566 = vunpack.c.l.b16 %v520
        %v567 = vunpack.c.h.b16 %v520
        %v568 = vunpack.c.l.b16 %v521
        %v569 = vunpack.c.h.b16 %v521
        %v570 = vunpack.c.l.b16 %v522
        %v571 = vunpack.c.h.b16 %v522
        %v572 = vunpack.c.l.b16 %v523
        %v573 = vunpack.c.h.b16 %v523
        %v574 = vunpack.c.l.b16 %v524
        %v575 = vunpack.c.h.b16 %v524
        %v576 = vunpack.c.l.b16 %v525
        %v577 = vunpack.c.h.b16 %v525
        %v578 = vunpack.c.l.b16 %v526
        %v579 = vunpack.c.h.b16 %v526
        %v580 = vunpack.c.l.b16 %v527
        %v581 = vunpack.c.h.b16 %v527
        %v582 = vunpack.c.l.b16 %v528
        %v583 = vunpack.c.h.b16 %v528
        %v584 = vunpack.c.l.b16 %v529
        %v585 = vunpack.c.h.b16 %v529
        %v586 = vunpack.c.l.b16 %v530
        %v587 = vunpack.c.h.b16 %v530
        %v588 = vunpack.c.l.b16 %v531
        %v589 = vunpack.c.h.b16 %v531
        %v590 = vunpack.c.l.b16 %v532
        %v591 = vunpack.c.h.b16 %v532
        %v592 = vunpack.c.l.b16 %v533
        %v593 = vunpack.c.h.b16 %v533
        %v594 = vpack.c.b16 %v564, %v562
        %v595 = vpack.c.b16 %v565, %v563
        %v596 = vpack.c.b16 %v568, %v566
        %v597 = vpack.c.b16 %v569, %v567
        %v598 = vpack.c.b16 %v572, %v570
        %v599 = vpack.c.b16 %v573, %v571
        %v600 = vpack.c.b16 %v576, %v574
        %v601 = vpack.c.b16 %v577, %v575
        %v602 = vpack.c.b16 %v580, %v578
        %v603 = vpack.c.b16 %v581, %v579
        %v604 = vpack.c.b16 %v584, %v582
        %v605 = vpack.c.b16 %v585, %v583
        %v606 = vpack.c.b16 %v588, %v586
        %v607 = vpack.c.b16 %v589, %v587
        %v608 = vpack.c.b16 %v592, %v590
        %v609 = vpack.c.b16 %v593, %v591
        %626 = vmatprep.subr.bf16.mxu0 %v609
        %627 = vmatpush1.bf16.msra.mxu0 %v608
        %628 = vmatprep.subr.bf16.mxu0 %v607
        %629 = vmatpush1.bf16.msra.mxu0 %v606
        %630 = vmatprep.subr.bf16.mxu0 %v605
        %631 = vmatpush1.bf16.msra.mxu0 %v604
        %632 = vmatprep.subr.bf16.mxu0 %v603
        %633 = vmatpush1.bf16.msra.mxu0 %v602
        %634 = vmatprep.subr.bf16.mxu0 %v601
        %635 = vmatpush1.bf16.msra.mxu0 %v600
        %636 = vmatprep.subr.bf16.mxu0 %v599
        %637 = vmatpush1.bf16.msra.mxu0 %v598
        %638 = vmatprep.subr.bf16.mxu0 %v597
        %639 = vmatpush1.bf16.msra.mxu0 %v596
        %640 = vmatprep.subr.bf16.mxu0 %v595
        %641 = vmatpush1.bf16.msra.mxu0 %v594
        %642 = vmatprep.subr.bf16.mxu0 0
        %643 = vmatpush2.bf16.msra.mxu0 0
        %644 = vmatprep.subr.bf16.mxu0 0
        %645 = vmatpush2.bf16.msra.mxu0 0
        %646 = vmatprep.subr.bf16.mxu0 0
        %647 = vmatpush2.bf16.msra.mxu0 0
        %648 = vmatprep.subr.bf16.mxu0 0
        %649 = vmatpush2.bf16.msra.mxu0 0
        %650 = vmatprep.subr.bf16.mxu0 0
        %651 = vmatpush2.bf16.msra.mxu0 0
        %652 = vmatprep.subr.bf16.mxu0 0
        %653 = vmatpush2.bf16.msra.mxu0 0
        %654 = vmatprep.subr.bf16.mxu0 0
        %655 = vmatpush2.bf16.msra.mxu0 0
        %656 = vmatprep.subr.bf16.mxu0 0
        %657 = vmatpush2.bf16.msra.mxu0 0
        %658 = vmatprep.mubr.bf16.mxu0 0
        %659 = vmatmul.mubr.bf16.gmra.mxu0 %v517
        %v660 = vpop.f32.mrf.mxu0
        %v661 = vadd.f32 %v539, %v660
        %v662 = vpop.f32.mrf.mxu0
        %v663 = vadd.f32 %v543, %v662
        %v664 = vpop.f32.mrf.mxu0
        %v665 = vadd.f32 %v539, %v664
        %v666 = vpop.f32.mrf.mxu0
        %v667 = vadd.f32 %v543, %v666
        %668 = vdwg.mxu0
        %v669 = vmax.f32 %v661, 0.0
        %v670 = vmax.f32 %v663, 0.0
        %v671 = vmax.f32 %v665, 0.0
        %v672 = vmax.f32 %v667, 0.0
        %v673 = vld [vmem:[#allocation2] sm:$0x3]
        %v674 = vmax.f32 %v669, %v671
        %v675 = vrot.slane %v674, 4
        %v676 = vmax.f32 %v674, %v675
        %v677 = vrot.slane %v676, 2
        %v678 = vmax.f32 %v676, %v677
        %v679 = vrot.slane %v678, 1
        %v680 = vmax.f32 %v678, %v679
        %v681 = vmax.f32 %v670, %v672
        %v682 = vrot.slane %v681, 4
        %v683 = vmax.f32 %v681, %v682
        %v684 = vrot.slane %v683, 2
        %v685 = vmax.f32 %v683, %v684
        %v686 = vrot.slane %v685, 1
        %v687 = vmax.f32 %v685, %v686
        %v690 = vcombine.low %v680, %v687
        %v692 = vunpack.c.l.s4 1966171168
        %v693 = vunpack.c.0.s8 %v692
        %v694 = vlaneseq
        %v695 = vshrl.u32 %v694, 7
        %v696 = vsub.s32 %v693, %v695
        %v697 = vrot.slane %v690, %v696
        %v699 = vunpack.c.l.s4 1966171168
        %v700 = vunpack.c.0.s8 %v699
        %v701 = vlaneseq
        %v702 = vshrl.u32 %v701, 7
        %v703 = vsub.s32 %v700, %v702
        %v704 = vrot.slane %v697, %v703
        %v706 = vmax.f32 %v673, %v704
        %v707 = vlaneseq
        %vm708 = vcmp.ge.s32.totalorder %v707, 0
        %vm709 = vcmp.lt.s32.totalorder %v707, 256
        %vm710 = vmand %vm708, %vm709
        %711 = vst.msk [vmem:[#allocation2] sm:$0x3] %vm710, %v706
        // Predicated region
        $region61: #{point_anchor_net.1} parent=55 // pred_check
          %p712 = pneg %p359
        $region62: #{point_anchor_net.1} parent=55 // pred_check_branch
          %714 = sbr.rel (%p712) target = $region64
        $region63: #{point_anchor_net.1} parent=55 // pred_region
          %v715 = vld [vmem:[#allocation2] sm:$0x3]
          %v717 = vlaneseq
          %v718 = vshrl.u32 %v717, 7
          %v719 = vsub.s32 0, %v718
          %v720 = vrot.slane %v715, %v719
          %v721 = vlaneseq
          %v722 = vshrl.u32 %v721, 7
          %v723 = vsub.s32 1, %v722
          %v724 = vrot.slane %v715, %v723
          %v727 = vpack.c.bf16 %v720, %v720
          %v728 = vpack.c.bf16 %v724, %v724
          %v729 = vld [vmem:[%s7] sm:$0xf]
          %v730 = vld [vmem:[%s7 + $0x4] sm:$0xf]
          %v731 = vld [vmem:[%s7 + $0x8] sm:$0xf]
          %v732 = vld [vmem:[%s7 + $0xc] sm:$0xf]
          %v733 = vld [vmem:[%s7 + $0x10] sm:$0xf]
          %v734 = vld [vmem:[%s7 + $0x14] sm:$0xf]
          %v735 = vld [vmem:[%s7 + $0x18] sm:$0xf]
          %v736 = vld [vmem:[%s7 + $0x1c] sm:$0xf]
          %v737 = vld [vmem:[%s7 + $0x20] sm:$0xf]
          %v738 = vld [vmem:[%s7 + $0x24] sm:$0xf]
          %v739 = vld [vmem:[%s7 + $0x28] sm:$0xf]
          %v740 = vld [vmem:[%s7 + $0x2c] sm:$0xf]
          %v741 = vld [vmem:[%s7 + $0x30] sm:$0xf]
          %v742 = vld [vmem:[%s7 + $0x34] sm:$0xf]
          %v743 = vld [vmem:[%s7 + $0x38] sm:$0xf]
          %v744 = vld [vmem:[%s7 + $0x3c] sm:$0xf]
          %v745 = vld [vmem:[%s7 + $0x40] sm:$0xf]
          %v746 = vld [vmem:[%s7 + $0x44] sm:$0xf]
          %v747 = vld [vmem:[%s7 + $0x48] sm:$0xf]
          %v748 = vld [vmem:[%s7 + $0x4c] sm:$0xf]
          %v749 = vld [vmem:[%s7 + $0x50] sm:$0xf]
          %v750 = vld [vmem:[%s7 + $0x54] sm:$0xf]
          %v751 = vld [vmem:[%s7 + $0x58] sm:$0xf]
          %v752 = vld [vmem:[%s7 + $0x5c] sm:$0xf]
          %v753 = vld [vmem:[%s7 + $0x60] sm:$0xf]
          %v754 = vld [vmem:[%s7 + $0x64] sm:$0xf]
          %v755 = vld [vmem:[%s7 + $0x68] sm:$0xf]
          %v756 = vld [vmem:[%s7 + $0x6c] sm:$0xf]
          %v757 = vld [vmem:[%s7 + $0x70] sm:$0xf]
          %v758 = vld [vmem:[%s7 + $0x74] sm:$0xf]
          %v759 = vld [vmem:[%s7 + $0x78] sm:$0xf]
          %v760 = vld [vmem:[%s7 + $0x7c] sm:$0xf]
          %v761 = vld [vmem:[%s8] sm:$0x1]
          %v794 = vunpack.c.l.b16 %v729
          %v795 = vunpack.c.l.b16 %v730
          %v796 = vunpack.c.l.b16 %v731
          %v797 = vunpack.c.l.b16 %v732
          %v798 = vunpack.c.l.b16 %v733
          %v799 = vunpack.c.l.b16 %v734
          %v800 = vunpack.c.l.b16 %v735
          %v801 = vunpack.c.l.b16 %v736
          %v802 = vunpack.c.l.b16 %v737
          %v803 = vunpack.c.l.b16 %v738
          %v804 = vunpack.c.l.b16 %v739
          %v805 = vunpack.c.l.b16 %v740
          %v806 = vunpack.c.l.b16 %v741
          %v807 = vunpack.c.l.b16 %v742
          %v808 = vunpack.c.l.b16 %v743
          %v809 = vunpack.c.l.b16 %v744
          %v810 = vunpack.c.l.b16 %v745
          %v811 = vunpack.c.l.b16 %v746
          %v812 = vunpack.c.l.b16 %v747
          %v813 = vunpack.c.l.b16 %v748
          %v814 = vunpack.c.l.b16 %v749
          %v815 = vunpack.c.l.b16 %v750
          %v816 = vunpack.c.l.b16 %v751
          %v817 = vunpack.c.l.b16 %v752
          %v818 = vunpack.c.l.b16 %v753
          %v819 = vunpack.c.l.b16 %v754
          %v820 = vunpack.c.l.b16 %v755
          %v821 = vunpack.c.l.b16 %v756
          %v822 = vunpack.c.l.b16 %v757
          %v823 = vunpack.c.l.b16 %v758
          %v824 = vunpack.c.l.b16 %v759
          %v825 = vunpack.c.l.b16 %v760
          %v826 = vpack.c.b16 %v795, %v794
          %v827 = vpack.c.b16 %v797, %v796
          %v828 = vpack.c.b16 %v799, %v798
          %v829 = vpack.c.b16 %v801, %v800
          %v830 = vpack.c.b16 %v803, %v802
          %v831 = vpack.c.b16 %v805, %v804
          %v832 = vpack.c.b16 %v807, %v806
          %v833 = vpack.c.b16 %v809, %v808
          %v834 = vpack.c.b16 %v811, %v810
          %v835 = vpack.c.b16 %v813, %v812
          %v836 = vpack.c.b16 %v815, %v814
          %v837 = vpack.c.b16 %v817, %v816
          %v838 = vpack.c.b16 %v819, %v818
          %v839 = vpack.c.b16 %v821, %v820
          %v840 = vpack.c.b16 %v823, %v822
          %v841 = vpack.c.b16 %v825, %v824
          %858 = vmatprep.subr.bf16.mxu0 0
          %859 = vmatpush1.bf16.msra.mxu0 %v833
          %860 = vmatprep.subr.bf16.mxu0 0
          %861 = vmatpush1.bf16.msra.mxu0 %v832
          %862 = vmatprep.subr.bf16.mxu0 0
          %863 = vmatpush1.bf16.msra.mxu0 %v831
          %864 = vmatprep.subr.bf16.mxu0 0
          %865 = vmatpush1.bf16.msra.mxu0 %v830
          %866 = vmatprep.subr.bf16.mxu0 0
          %867 = vmatpush1.bf16.msra.mxu0 %v829
          %868 = vmatprep.subr.bf16.mxu0 0
          %869 = vmatpush1.bf16.msra.mxu0 %v828
          %870 = vmatprep.subr.bf16.mxu0 0
          %871 = vmatpush1.bf16.msra.mxu0 %v827
          %872 = vmatprep.subr.bf16.mxu0 0
          %873 = vmatpush1.bf16.msra.mxu0 %v826
          %874 = vmatprep.subr.bf16.mxu0 0
          %875 = vmatpush2.bf16.msra.mxu0 %v841
          %876 = vmatprep.subr.bf16.mxu0 0
          %877 = vmatpush2.bf16.msra.mxu0 %v840
          %878 = vmatprep.subr.bf16.mxu0 0
          %879 = vmatpush2.bf16.msra.mxu0 %v839
          %880 = vmatprep.subr.bf16.mxu0 0
          %881 = vmatpush2.bf16.msra.mxu0 %v838
          %882 = vmatprep.subr.bf16.mxu0 0
          %883 = vmatpush2.bf16.msra.mxu0 %v837
          %884 = vmatprep.subr.bf16.mxu0 0
          %885 = vmatpush2.bf16.msra.mxu0 %v836
          %886 = vmatprep.subr.bf16.mxu0 0
          %887 = vmatpush2.bf16.msra.mxu0 %v835
          %888 = vmatprep.subr.bf16.mxu0 0
          %889 = vmatpush2.bf16.msra.mxu0 %v834
          %890 = vmatprep.mubr.bf16.mxu0 %v728
          %891 = vmatmul.mubr.bf16.gmra.mxu0 %v727
          %v892 = vpop.f32.mrf.mxu0
          %v893 = vadd.f32 %v761, %v892
          %v894 = vpop.f32.mrf.mxu0
          %v895 = vpop.f32.mrf.mxu0
          %v896 = vpop.f32.mrf.mxu0
          %897 = vdwg.mxu0
          %898 = vst [vmem:[%s347] sm:$0x1] %v893
        $region64: #{point_anchor_net.1} parent=55 // pred_fallthru
          _
        %s899 = sand.u32 %s239, 1
        %s900 = scalar_lea.sflag [#allocation4], %s899
        %s901 = sand.u32 %s239, 1
        %s902 = scalar_lea.vmem [#allocation3], %s901
        // Predicated region
        $region65: #{point_anchor_net.1} parent=55 // pred_check
          %p903 = pneg %p249
        $region66: #{point_anchor_net.1} parent=55 // pred_check_branch
          %905 = sbr.rel (%p903) target = $region68
        $region67: #{point_anchor_net.1} parent=55 // pred_region
          %s907 = ssub.s32 16, 16
          %908 = vsyncadd %s900, %s907
          %s909 = smul.addr %s27, 16
          %s910 = scalar_lea.hbm %s9, %s909
          %s912 = sshll.u32 %s902, 4
          %s913 = int_to_ptr.vmem [resolvable:$true] %s912
          %915 = dma.vmem_to_hbm [thread:$0]  %s913, 16, %s910, %s900
        $region68: #{point_anchor_net.1} parent=55 // pred_fallthru
          _
      $region56: #{point_anchor_net.1} parent=5 // pred_fallthru
        _
      %p916 = scmp.le.s32.totalorder 2, %s18
      // Predicated region
      $region69: #{point_anchor_net.1} parent=5 // pred_check
        %p917 = pneg %p916
      $region70: #{point_anchor_net.1} parent=5 // pred_check_branch
        %919 = sbr.rel (%p917) target = $region72
      $region71: #{point_anchor_net.1} parent=5 // pred_region
        %s920 = ssub.s32 %s18, 2
        // Predicated region
        $region73: #{point_anchor_net.1} parent=71 // pred_check
          %p921 = pneg %p255
        $region74: #{point_anchor_net.1} parent=71 // pred_check_branch
          %923 = sbr.rel (%p921) target = $region76
        $region75: #{point_anchor_net.1} parent=71 // pred_region
          %s924 = sand.u32 %s240, 1
          %s925 = scalar_lea.sflag [#allocation4], %s924
          %s926 = sand.u32 %s240, 1
          %s927 = scalar_lea.vmem [#allocation3], %s926
          %928 = dma.done %s925, 16
        $region76: #{point_anchor_net.1} parent=71 // pred_fallthru
          _
      $region72: #{point_anchor_net.1} parent=5 // pred_fallthru
        _
    $region6: #{point_anchor_net.1} parent=1 // loop_footer
      %s22 = sadd.s32 1, %s18
    $region7: #{point_anchor_net.1} parent=1 // loop_footer_branch
      %17 = sbr.rel target = $region3
    $region8: #{point_anchor_net.1} parent=1 // loop_exit
      _
    %929 = vsyncpa [#allocation4], 1
    %s930 = scalar_lea.sflag [#allocation4], 1
    %931 = vsyncpa %s930, 1

</llo_original>
